<compile_context>
chip_gen: v7x
topology: tpu7x:2x2x1
jax: 0.10.0
libtpu: 0.0.40
codegen_flags: <defaults>
</compile_context>

<pallas_src>
import functools

import numpy as np
import jax
import jax.numpy as jnp
from jax.experimental import pallas as pl
from jax.experimental.pallas import tpu as pltpu


def _round_up(x, m):
    return (x + m - 1) // m * m


def fm_ips_kernel(idx_ref, tab_ref, bias_ref, out_ref, se_ref, s2_ref,
                  *, num_fields):
    # idx_ref : (B_pad * F,)  int32  SMEM (scalar prefetch), batch-major
    # tab_ref : (V_pad, D+1)  f32    VMEM, resident fused [emb | linear] table
    # bias_ref: (1, 1)        f32    SMEM scalar
    # out_ref : (TILE_B, 1)   f32    per-batch-tile output block
    # se_ref  : (TILE_B, D+1) f32    scratch: sum over fields of gathered rows
    # s2_ref  : (TILE_B, D+1) f32    scratch: sum over fields of squared rows
    tile_b, dp = se_ref.shape
    d = dp - 1
    base = pl.program_id(0) * tile_b * num_fields

    # True gather: one dynamic row slice per (batch element, field).
    @pl.loop(0, tile_b)
    def _gather(b):
        j = base + b * num_fields
        row = tab_ref[pl.ds(idx_ref[j], 1), :]                 # (1, D+1)
        se = row
        s2 = row * row
        for f in range(1, num_fields):                         # static, tiny
            r = tab_ref[pl.ds(idx_ref[j + f], 1), :]
            se = se + r
            s2 = s2 + r * r
        se_ref[pl.ds(b, 1), :] = se
        s2_ref[pl.ds(b, 1), :] = s2

    # Vectorized finalize over the whole batch tile.
    se = se_ref[...]                                           # (TILE_B, D+1)
    s2 = s2_ref[...]
    col = jax.lax.broadcasted_iota(jnp.int32, (tile_b, dp), 1)
    fm = 0.5 * jnp.sum(jnp.where(col < d, se * se - s2, 0.0),
                       axis=1, keepdims=True)                  # (TILE_B, 1)
    lin = jnp.sum(jnp.where(col == d, se, 0.0),
                  axis=1, keepdims=True)                       # (TILE_B, 1)
    out_ref[...] = fm + lin + bias_ref[0, 0]


def prepare_fm_ips_tables(emb_table, lin_table, field_dims):
    """One-time (model-init) prep: fused f32 [embedding | linear] table + offsets."""
    V, D = emb_table.shape
    dp = D + 1
    v_pad = _round_up(max(V, 8), 8)
    fused = jnp.zeros((v_pad, dp), jnp.float32)
    fused = fused.at[:V, :D].set(emb_table.astype(jnp.float32))
    fused = fused.at[:V, D].set(lin_table.reshape(-1).astype(jnp.float32))
    offsets = jnp.asarray(
        np.array((0, *np.cumsum(field_dims)[:-1]), dtype=np.int32))
    return fused, offsets


def fm_ips_forward(x, fused_table, offsets, bias, *, tile_b=256):
    """x: (B, F) int32 with 1-based indices per field (mirrors `x - 1`)."""
    B, F = x.shape
    v_pad, dp = fused_table.shape

    tb = min(tile_b, _round_up(B, 8))
    nb = pl.cdiv(B, tb)
    b_pad = nb * tb

    # Per-call work is only this tiny index arithmetic.  Clamp keeps every
    # gather in-bounds of the VMEM block (PyTorch would error on bad indices;
    # padded / clamped rows are discarded or zero).
    idx = (x.astype(jnp.int32) - 1) + offsets[None, :]
    idx = jnp.clip(idx, 0, v_pad - 1)
    idx_flat = jnp.zeros((b_pad * F,), jnp.int32).at[:B * F].set(idx.reshape(-1))

    bias2d = jnp.asarray(bias, jnp.float32).reshape(1, 1)

    table_bytes = v_pad * dp * 4
    scratch_bytes = 2 * tb * dp * 4
    assert table_bytes + scratch_bytes < 24 * 1024 * 1024, (
        "fused table too large for the resident-VMEM gather path; "
        "use an HBM DMA row-gather instead")

    cost = pl.CostEstimate(
        flops=int(b_pad) * int(dp) * (3 * F + 5),
        transcendentals=0,
        bytes_accessed=table_bytes + b_pad * F * 4 + b_pad * 4,
    )

    kernel = functools.partial(fm_ips_kernel, num_fields=F)

    out = pl.pallas_call(
        kernel,
        out_shape=jax.ShapeDtypeStruct((b_pad, 1), jnp.float32),
        grid_spec=pltpu.PrefetchScalarGridSpec(
            num_scalar_prefetch=1,
            grid=(nb,),
            in_specs=[
                # Resident table: constant block index -> one HBM read total.
                pl.BlockSpec((v_pad, dp), lambda i, idx_sm: (0, 0)),
                # Bias scalar.
                pl.BlockSpec(memory_space=pltpu.MemorySpace.SMEM),
            ],
            out_specs=pl.BlockSpec((tb, 1), lambda i, idx_sm: (i, 0)),
            scratch_shapes=[pltpu.VMEM((tb, dp), jnp.float32),
                            pltpu.VMEM((tb, dp), jnp.float32)],
        ),
        compiler_params=pltpu.CompilerParams(
            dimension_semantics=("parallel",),
            vmem_limit_bytes=32 * 1024 * 1024),
        cost_estimate=cost,
    )(idx_flat, fused_table, bias2d)

    return out[:B, 0]                                          # (B,)


def _reference_forward(x, emb_table, lin_table, bias, field_dims):
    """Plain-JAX reference (mirrors the PyTorch module)."""
    offsets = jnp.asarray(
        np.array((0, *np.cumsum(field_dims)[:-1]), dtype=np.int32))
    idx = (x.astype(jnp.int32) - 1) + offsets[None, :]
    e = emb_table[idx]                                         # (B, F, D)
    lin = jnp.sum(lin_table[idx][..., 0], axis=1) + bias[0]    # (B,)
    sq_of_sum = jnp.sum(e, axis=1) ** 2
    sum_of_sq = jnp.sum(e * e, axis=1)
    fm = 0.5 * jnp.sum(sq_of_sum - sum_of_sq, axis=-1)         # (B,)
    return lin + fm


if __name__ == "__main__":
    def run_case(field_dims, embed_dim, batch, seed):
        vocab = int(sum(field_dims))
        key = jax.random.PRNGKey(seed)
        k_emb, k_lin, *k_fields = jax.random.split(key, 2 + len(field_dims))

        # FeaturesEmbedding: xavier_normal_ init on (vocab, embed_dim)
        xavier_std = float(np.sqrt(2.0 / (vocab + embed_dim)))
        emb_table = (jax.random.normal(k_emb, (vocab, embed_dim), jnp.float32)
                     * xavier_std)
        # FeaturesLinear: nn.Embedding(vocab, 1) weight, bias zeros
        lin_table = jax.random.normal(k_lin, (vocab, 1), jnp.float32)
        bias = jnp.zeros((1,), jnp.float32)

        # 1-based indices per field (the forward subtracts 1)
        cols = [jax.random.randint(kf, (batch,), 1, fd + 1, jnp.int32)
                for kf, fd in zip(k_fields, field_dims)]
        x = jnp.stack(cols, axis=1)                            # (B, F)

        fused, offsets = prepare_fm_ips_tables(emb_table, lin_table, field_dims)
        out = fm_ips_forward(x, fused, offsets, bias)
        out = jax.block_until_ready(out)

        ref = _reference_forward(x, emb_table, lin_table, bias, field_dims)
        np.testing.assert_allclose(np.asarray(out), np.asarray(ref),
                                   rtol=1e-5, atol=1e-5)

    # Small demo case (matches the module's tiny-config usage).
    run_case(field_dims=[16, 24], embed_dim=32, batch=8, seed=0)
    # Multi-batch-tile case (nb=2, non-multiple-of-8 vocab) to exercise tiling.
    run_case(field_dims=[150, 200], embed_dim=32, batch=300, seed=1)

    print("KERNEL_OK")
</pallas_src>

<mosaic_0001>
module attributes {stable_mosaic.version = 11 : i64} {
  func.func @fm_ips_kernel(%arg0: i32, %arg1: memref<16xi32, #tpu.memory_space<smem>>, %arg2: memref<40x33xf32, #tpu.memory_space<vmem>>, %arg3: memref<1x1xf32, #tpu.memory_space<smem>>, %arg4: memref<8x1xf32, #tpu.memory_space<vmem>>, %arg5: memref<8x33xf32, #tpu.memory_space<vmem>>, %arg6: memref<8x33xf32, #tpu.memory_space<vmem>>) attributes {dimension_semantics = [#tpu.dimension_semantics<parallel>], iteration_bounds = array<i64: 1>, scalar_prefetch = 1 : i64, scratch_operands = 2 : i64, tpu.core_type = #tpu.core_type<tc>, window_params = [{pipeline_mode = #tpu.pipeline_mode<synchronous>, transform_indices = @transform_0, window_bounds = array<i64: 40, 33>}, {transform_indices = @transform_1, window_bounds = array<i64: 1, 1>}, {transform_indices = @transform_2, window_bounds = array<i64: 8, 1>}]} {
    %c8_i32 = arith.constant 8 : i32
    %0 = arith.muli %arg0, %c8_i32 : i32
    %c2_i32 = arith.constant 2 : i32
    %1 = arith.muli %0, %c2_i32 : i32
    %c0_i32 = arith.constant 0 : i32
    %c8_i32_0 = arith.constant 8 : i32
    %2 = arith.addi %c0_i32, %c8_i32_0 : i32
    %c1_i32 = arith.constant 1 : i32
    scf.for %arg7 = %c0_i32 to %2 step %c1_i32  : i32 {
      %c1_i32_14 = arith.constant 1 : i32
      %27 = arith.muli %arg7, %c1_i32_14 : i32
      %c0_i32_15 = arith.constant 0 : i32
      %28 = arith.addi %c0_i32_15, %27 : i32
      %c2_i32_16 = arith.constant 2 : i32
      %29 = arith.muli %28, %c2_i32_16 : i32
      %30 = arith.addi %1, %29 : i32
      %31 = arith.index_cast %30 : i32 to index
      %32 = memref.load %arg1[%31] : memref<16xi32, #tpu.memory_space<smem>>
      %33 = arith.index_cast %32 : i32 to index
      %c0_17 = arith.constant 0 : index
      %34 = vector.load %arg2[%33, %c0_17] : memref<40x33xf32, #tpu.memory_space<vmem>>, vector<1x33xf32>
      %35 = arith.mulf %34, %34 : vector<1x33xf32>
      %c1_i32_18 = arith.constant 1 : i32
      %36 = arith.addi %30, %c1_i32_18 : i32
      %37 = arith.index_cast %36 : i32 to index
      %38 = memref.load %arg1[%37] : memref<16xi32, #tpu.memory_space<smem>>
      %39 = arith.index_cast %38 : i32 to index
      %c0_19 = arith.constant 0 : index
      %40 = vector.load %arg2[%39, %c0_19] : memref<40x33xf32, #tpu.memory_space<vmem>>, vector<1x33xf32>
      %41 = arith.addf %34, %40 : vector<1x33xf32>
      %42 = arith.mulf %40, %40 : vector<1x33xf32>
      %43 = arith.addf %35, %42 : vector<1x33xf32>
      %44 = arith.index_cast %28 : i32 to index
      %c0_20 = arith.constant 0 : index
      %45 = vector.load %arg5[%44, %c0_20] : memref<8x33xf32, #tpu.memory_space<vmem>>, vector<1x33xf32>
      tpu.vector_store %arg5[%44, %c0_20], %41 {strides = array<i32>} : memref<8x33xf32, #tpu.memory_space<vmem>>, vector<1x33xf32>,
      %46 = arith.index_cast %28 : i32 to index
      %c0_21 = arith.constant 0 : index
      %47 = vector.load %arg6[%46, %c0_21] : memref<8x33xf32, #tpu.memory_space<vmem>>, vector<1x33xf32>
      tpu.vector_store %arg6[%46, %c0_21], %43 {strides = array<i32>} : memref<8x33xf32, #tpu.memory_space<vmem>>, vector<1x33xf32>,
    }
    %c8_i32_1 = arith.constant 8 : i32
    %c0 = arith.constant 0 : index
    %c0_2 = arith.constant 0 : index
    %3 = vector.load %arg5[%c0, %c0_2] : memref<8x33xf32, #tpu.memory_space<vmem>>, vector<8x33xf32>
    %c0_3 = arith.constant 0 : index
    %c0_4 = arith.constant 0 : index
    %4 = vector.load %arg6[%c0_3, %c0_4] : memref<8x33xf32, #tpu.memory_space<vmem>>, vector<8x33xf32>
    %5 = tpu.iota {dimensions = array<i32: 1>} : vector<8x33xi32>
    %c32_i32 = arith.constant 32 : i32
    %6 = vector.broadcast %c32_i32 : i32 to vector<8x33xi32>
    %7 = arith.cmpi slt, %5, %6 : vector<8x33xi32>
    %8 = arith.mulf %3, %3 : vector<8x33xf32>
    %9 = arith.subf %8, %4 : vector<8x33xf32>
    %cst = arith.constant 0.000000e+00 : f32
    %10 = vector.broadcast %cst : f32 to vector<8x33xf32>
    %11 = arith.select %7, %9, %10 : vector<8x33xi1>, vector<8x33xf32>
    %cst_5 = arith.constant dense<0.000000e+00> : vector<8xf32>
    %12 = vector.multi_reduction <add>, %11, %cst_5 [1] : vector<8x33xf32> to vector<8xf32>
    %13 = vector.shape_cast %12 : vector<8xf32> to vector<8x1xf32>
    %cst_6 = arith.constant 5.000000e-01 : f32
    %14 = vector.broadcast %cst_6 : f32 to vector<8x1xf32>
    %15 = arith.mulf %14, %13 : vector<8x1xf32>
    %c32_i32_7 = arith.constant 32 : i32
    %16 = vector.broadcast %c32_i32_7 : i32 to vector<8x33xi32>
    %17 = arith.cmpi eq, %5, %16 : vector<8x33xi32>
    %cst_8 = arith.constant 0.000000e+00 : f32
    %18 = vector.broadcast %cst_8 : f32 to vector<8x33xf32>
    %19 = arith.select %17, %3, %18 : vector<8x33xi1>, vector<8x33xf32>
    %cst_9 = arith.constant dense<0.000000e+00> : vector<8xf32>
    %20 = vector.multi_reduction <add>, %19, %cst_9 [1] : vector<8x33xf32> to vector<8xf32>
    %21 = vector.shape_cast %20 : vector<8xf32> to vector<8x1xf32>
    %22 = arith.addf %15, %21 : vector<8x1xf32>
    %c0_10 = arith.constant 0 : index
    %c0_11 = arith.constant 0 : index
    %23 = memref.load %arg3[%c0_10, %c0_11] : memref<1x1xf32, #tpu.memory_space<smem>>
    %24 = vector.broadcast %23 : f32 to vector<8x1xf32>
    %25 = arith.addf %22, %24 : vector<8x1xf32>
    %c0_12 = arith.constant 0 : index
    %c0_13 = arith.constant 0 : index
    %26 = vector.load %arg4[%c0_12, %c0_13] : memref<8x1xf32, #tpu.memory_space<vmem>>, vector<8x1xf32>
    tpu.vector_store %arg4[%c0_12, %c0_13], %25 {strides = array<i32>} : memref<8x1xf32, #tpu.memory_space<vmem>>, vector<8x1xf32>,
    return
  }
  func.func @transform_0(%arg0: i32, %arg1: memref<16xi32, #tpu.memory_space<smem>>) -> (i32, i32) {
    %c0_i32 = arith.constant 0 : i32
    %c0_i32_0 = arith.constant 0 : i32
    %c0_i32_1 = arith.constant 0 : i32
    return %c0_i32, %c0_i32_0 : i32, i32
  }
  func.func @transform_1(%arg0: i32, %arg1: memref<16xi32, #tpu.memory_space<smem>>) -> (i32, i32) {
    %c0_i32 = arith.constant 0 : i32
    %c0_i32_0 = arith.constant 0 : i32
    %c0_i32_1 = arith.constant 0 : i32
    return %c0_i32, %c0_i32_0 : i32, i32
  }
  func.func @transform_2(%arg0: i32, %arg1: memref<16xi32, #tpu.memory_space<smem>>) -> (i32, i32) {
    %c0_i32 = arith.constant 0 : i32
    %c0_i32_0 = arith.constant 0 : i32
    return %arg0, %c0_i32 : i32, i32
  }
}

</mosaic_0001>

<llo_original>
// kernel: tpu_custom_call.1
$region0: #{tpu_custom_call.1}
  #allocation0 [shape = 'u32[]', space=smem, size = 0x4, offset = 0x4, fixed_abs, tag = 'smem constant byte address 0x4 - core index']
  #allocation1 [shape = 'u32[144,128]{1,0:T(1,128)}', space=vmem, size = 0x12000, scoped, tag = 'internal scratch']
  #allocation2 [shape = 'f32[8,33]{1,0:T(8,128)}', space=vmem, size = 0x1000, scoped, tag = 'scratch operand']
  #allocation3 [shape = 'f32[8,33]{1,0:T(8,128)}', space=vmem, size = 0x1000, scoped, tag = 'scratch operand']
  #allocation4 [shape = 's32[1]{0}', space=sflag, size = 0x4, scoped, tag = 'scoped memory for tpu_custom_call.1']
  #allocation5 [shape = 'u8[512]{0}', space=smem, size = 0x200, scoped, tag = 'prefetched SMEM operand 0']
  #allocation6 [shape = 'f32[1,1]{1,0:T(1,128)S(6)}', space=smem, size = 0x200, scoped, tag = 'scoped memory for tpu_custom_call.1']
  %s0 = inlined_call_operand.vmem [shape: s32[16], index: 0, kind: input, shape index: {}]
  %s1 = inlined_call_operand.hbm [shape: f32[40,33], index: 1, kind: input, shape index: {}]
  %s2 = inlined_call_operand.<no memory space> [shape: f32[1,1], index: 2, kind: input, shape index: {}]
  %s3 = inlined_call_operand.vmem [shape: f32[8,1], index: 3, kind: output, shape index: {}]
  %s4 = sld [smem:[#allocation0]]
  $region29: #{tpu_custom_call.1} parent=0
    _
  %s6 = ssub.s32 1, %s4
  %s7 = scalar_select 0, %s6, %s4
  %s8 = sshll.u32 %s0, 4
  %s9 = int_to_ptr.vmem [resolvable:$true] %s8
  %11 = dma.vmem_to_smem %s9, 16, [#allocation5], [#allocation4]
  %12 = sst [smem:[#allocation6]] %s2
  %13 = dma.done [#allocation4], 16
  %14 = sfence
  $region1: #{tpu_custom_call.1} parent=0
    #allocation7 [shape = 'u8[20480]{0}', space=vmem, size = 0x5000, scoped, tag = 'input window, operand 1, single buffered']
    #allocation8 [shape = 's32[1]{0}', space=sflag, size = 0x4, scoped, tag = 'scoped memory for tpu_custom_call.1']
    %15 = vsyncpa [#allocation8], 0
    // Predicated region
    $region2: #{tpu_custom_call.1} parent=1 // pred_check
      _
    $region3: #{tpu_custom_call.1} parent=1 // pred_check_branch
      %17 = sbr.rel (0) target = $region5
    $region4: #{tpu_custom_call.1} parent=1 // pred_region
      %s19 = ssub.s32 640, 640
      %20 = vsyncadd [#allocation8], %s19
      %s21 = sshll.u32 [#allocation7], 4
      %s22 = int_to_ptr.vmem [resolvable:$true] %s21
      %27 = dma.hbm_to_vmem [thread:$0]  %s1, 640, %s22, [#allocation8], 128, 128, 8
    $region5: #{tpu_custom_call.1} parent=1 // pred_fallthru
      _
    // Predicated region
    $region6: #{tpu_custom_call.1} parent=1 // pred_check
      _
    $region7: #{tpu_custom_call.1} parent=1 // pred_check_branch
      %29 = sbr.rel (0) target = $region9
    $region8: #{tpu_custom_call.1} parent=1 // pred_region
      _
    $region9: #{tpu_custom_call.1} parent=1 // pred_fallthru
      _
    // Predicated region
    $region10: #{tpu_custom_call.1} parent=1 // pred_check
      _
    $region11: #{tpu_custom_call.1} parent=1 // pred_check_branch
      %31 = sbr.rel (0) target = $region13
    $region12: #{tpu_custom_call.1} parent=1 // pred_region
      %32 = dma.done [#allocation8], 640
    $region13: #{tpu_custom_call.1} parent=1 // pred_fallthru
      _
    %s33 = smul.u32 0, 16
    loop: start=0, step=1, limit=8
    $region14: #{tpu_custom_call.1} parent=1 // loop_pre_header
      _
    $region15: #{tpu_custom_call.1} parent=1 // loop_header
      %s35 = sphi 0, %s39
      %p36 = scmp.ge.s32.totalorder %s35, 8
    $region16: #{tpu_custom_call.1} parent=1 // loop_header_branch
      %38 = sbr.rel (%p36) target = $region20
    $region17: #{tpu_custom_call.1} parent=1 // loop_body
      %s40 = smul.u32 %s35, 2
      %s41 = sadd.s32 %s33, %s40
      %s42 = sld [smem:[#allocation5 + %s41]]
      %s43 = scalar_lea.vmem [#allocation7], %s42
      %v44 = vld [vmem:[%s43] sm:$0x1]
      %v45 = vmul.f32 %v44, %v44
      %s46 = sadd.s32 %s41, 1
      %s47 = sld [smem:[#allocation5 + %s46]]
      %s48 = scalar_lea.vmem [#allocation7], %s47
      %v49 = vld [vmem:[%s48] sm:$0x1]
      %v50 = vadd.f32 %v44, %v49
      %v51 = vmul.f32 %v49, %v49
      %v52 = vadd.f32 %v45, %v51
      %s53 = scalar_lea.vmem [#allocation2], %s35
      %vm54 = vcmask 262144
      %55 = vst.msk [vmem:[%s53] sm:$0x1] %vm54, %v50
      %s56 = scalar_lea.vmem [#allocation3], %s35
      %57 = vst.msk [vmem:[%s56] sm:$0x1] %vm54, %v52
    $region18: #{tpu_custom_call.1} parent=1 // loop_footer
      %s39 = sadd.s32 1, %s35
    $region19: #{tpu_custom_call.1} parent=1 // loop_footer_branch
      %34 = sbr.rel target = $region15
    $region20: #{tpu_custom_call.1} parent=1 // loop_exit
      _
    %v58 = vld [vmem:[#allocation2] sm:$0xff]
    %v59 = vld [vmem:[#allocation3] sm:$0xff]
    %v60 = vlaneseq
    %v61 = vand.u32 %v60, 127
    %vm62 = vcmp.lt.s32.totalorder %v61, 32
    %v63 = vmul.f32 %v58, %v58
    %v64 = vsub.f32 %v63, %v59
    %v65 = vsel %vm62, %v64, 0.0
    %vm66 = vcmask 269312
    %v67 = vsel %vm66, %v65, 0.0
    %68 = vadd.xlane.f32.xlu0 %v67
    %v69 = vpop.xlane.xlu0 %68
    %v70 = vmul.f32 %v69, 0.5
    %vm71 = vcmp.eq.s32.totalorder %v61, 32
    %v72 = vsel %vm71, %v58, 0.0
    %v73 = vsel %vm66, %v72, 0.0
    %74 = vadd.xlane.f32.xlu0 %v73
    %v75 = vpop.xlane.xlu0 %74
    %v76 = vadd.f32 %v70, %v75
    %s77 = sld [smem:[#allocation6]]
    %v78 = vstv %s77
    %v79 = vadd.f32 %v76, %v78
    %vm80 = vcmask 7168
    %81 = vst.msk [vmem:[%s3] sm:$0xff] %vm80, %v79
    // Predicated region
    $region21: #{tpu_custom_call.1} parent=1 // pred_check
      _
    $region22: #{tpu_custom_call.1} parent=1 // pred_check_branch
      %83 = sbr.rel (0) target = $region24
    $region23: #{tpu_custom_call.1} parent=1 // pred_region
      _
    $region24: #{tpu_custom_call.1} parent=1 // pred_fallthru
      _
    // Predicated region
    $region25: #{tpu_custom_call.1} parent=1 // pred_check
      _
    $region26: #{tpu_custom_call.1} parent=1 // pred_check_branch
      %85 = sbr.rel (0) target = $region28
    $region27: #{tpu_custom_call.1} parent=1 // pred_region
      _
    $region28: #{tpu_custom_call.1} parent=1 // pred_fallthru
      _
    %86 = vsyncpa [#allocation8], 1

</llo_original>
